<compile_context>
chip_gen: v5e
topology: v5e:2x2
jax: 0.10.0
libtpu: 0.0.40
codegen_flags: <defaults>
</compile_context>

<pallas_src>
import functools

import jax
import jax.numpy as jnp
import numpy as np
from jax.experimental import pallas as pl
from jax.experimental.pallas import tpu as pltpu

LN_EPS = 1e-5  # PyTorch nn.LayerNorm default


def _round_up(x, m):
    return ((x + m - 1) // m) * m


# ----------------------------------------------------------------------------
# Kernel
# ----------------------------------------------------------------------------
def actor_kernel(x_ref, w1_ref, w2_ref, w3_ref, w4_ref, w5_ref, pk_ref, out_ref,
                 *, true_dims, n_slabs):
    """One batch tile of the fused actor MLP.

    x_ref:   (TILE_B, input_dim)        activations (f32)
    w*_ref:  (d_in_pad, d_out_pad)      pre-transposed, lane-padded weights
                                        (bf16 or f32), VMEM-resident
    pk_ref:  (13, P)                    packed f32 rows
                                        [b1,g1,be1, ..., b4,g4,be4, b5], padded
    out_ref: (TILE_B, OUT_PAD)          lane-dense tanh(mu) output (f32)
    true_dims: static (fc1, fc2, fc3, fc4) TRUE widths for LN statistics
    n_slabs:   static 1 or 2 independent batch halves
    """
    w_refs = (w1_ref, w2_ref, w3_ref, w4_ref)

    # Per-layer LN params: ref-level (1, d_pad) loads (cheap sublane-strided
    # VMEM loads), hoisted once, instead of value-level row slices of a
    # materialized (13, P) array (which lower to XLU sublane selects).
    ln_params = []
    for li, w_ref in enumerate(w_refs):
        dpad = w_ref.shape[1]
        row = 3 * li
        ln_params.append((pk_ref[pl.ds(row, 1), pl.ds(0, dpad)],
                          pk_ref[pl.ds(row + 1, 1), pl.ds(0, dpad)],
                          pk_ref[pl.ds(row + 2, 1), pl.ds(0, dpad)]))
    b5 = pk_ref[pl.ds(12, 1), pl.ds(0, w5_ref.shape[1])]

    tile_b = x_ref.shape[0]
    rows = tile_b // n_slabs

    # Two independent batch halves (n_slabs=2) form two independent dataflow
    # chains in the same basic block, letting the LLO scheduler overlap one
    # half's MXU pass with the other's XLU/EUP work at layer boundaries.
    for s in range(n_slabs):
        off = s * rows
        h = x_ref[pl.ds(off, rows), :].astype(jnp.float32)
        for w_ref, d_true, (b, g, be) in zip(w_refs, true_dims, ln_params):
            z = jnp.dot(h.astype(w_ref.dtype), w_ref[...],
                        preferred_element_type=jnp.float32) + b
            # One-pass LN statistics (f32).  Padded lanes of z are exactly 0
            # (zero weight columns / zero bias), so summing over the full
            # padded width is exact as long as inv_d uses the TRUE width.
            # Note: s2/d - mean^2 can lose precision when |mean| >> std; the
            # clamp keeps it NaN-free, and ReLU'd MLP activations are benign.
            s1 = jnp.sum(z, axis=-1, keepdims=True)
            s2 = jnp.sum(z * z, axis=-1, keepdims=True)
            inv_d = jnp.float32(1.0 / d_true)
            mean = s1 * inv_d
            var = jnp.maximum(s2 * inv_d - mean * mean, 0.0)
            z = (z - mean) * jax.lax.rsqrt(var + jnp.float32(LN_EPS))
            # Padded lanes: gamma = beta = 0 -> exactly 0 into the next layer.
            z = z * g + be
            h = jnp.maximum(z, 0.0)
        mu = jnp.dot(h.astype(w5_ref.dtype), w5_ref[...],
                     preferred_element_type=jnp.float32) + b5
        out_ref[pl.ds(off, rows), :] = jnp.tanh(mu).astype(out_ref.dtype)


# ----------------------------------------------------------------------------
# Wrapper
# ----------------------------------------------------------------------------
@functools.partial(jax.jit, static_argnames=("true_dims", "n_actions", "tile_b"))
def actor_forward(state, ws, pk, *, true_dims, n_actions, tile_b=1024):
    """state: [B, input_dim] f32.  ws/pk/true_dims from pack_actor_params."""
    B, input_dim = state.shape
    out_pad = ws[4].shape[1]

    # Batch tile: as large as practical (VMEM is NOT the constraint here;
    # <3 MiB total even at tile_b=1024), but clamp to the actual batch and
    # keep it a multiple of 16 so it can be split into two sublane-aligned
    # halves inside the kernel.
    tb = max(8, min(int(tile_b), _round_up(B, 8)))
    if tb >= 16:
        tb = _round_up(tb, 16)
    # Guarantee >= 2 "parallel" grid steps for moderate batches so v7x's two
    # TensorCores both get work; the extra step is negligible on v5e/v6e.
    if B >= 32 and _round_up(B, tb) == tb:
        tb = min(tb, _round_up((B + 1) // 2, 16))
    b_pad = _round_up(B, tb)
    grid = (b_pad // tb,)
    n_slabs = 2 if (tb >= 16 and tb % 16 == 0) else 1

    if b_pad != B:
        # Padded batch rows are zeros; through LN they become garbage-but-
        # finite values (var clamp + tanh keep them bounded) and are sliced
        # off below, never observed.
        state = jnp.pad(state, ((0, b_pad - B), (0, 0)))

    in_specs = [pl.BlockSpec((tb, input_dim), lambda i: (i, 0))]
    in_specs += [pl.BlockSpec(w.shape, lambda i: (0, 0)) for w in ws]  # resident
    in_specs += [pl.BlockSpec(pk.shape, lambda i: (0, 0))]             # resident

    dp = [int(w.shape[1]) for w in ws]  # padded (lane-dense) widths
    flops = 2 * b_pad * (input_dim * dp[0] + dp[0] * dp[1] + dp[1] * dp[2]
                         + dp[2] * dp[3] + dp[3] * dp[4])
    transcendentals = b_pad * (4 + dp[4])          # 4 rsqrt rows + tanh lanes
    bytes_accessed = (int(state.size) * state.dtype.itemsize
                      + sum(int(w.size) * w.dtype.itemsize for w in ws)
                      + int(pk.size) * 4
                      + b_pad * out_pad * 4)

    kernel = functools.partial(actor_kernel, true_dims=true_dims,
                               n_slabs=n_slabs)
    out = pl.pallas_call(
        kernel,
        out_shape=jax.ShapeDtypeStruct((b_pad, out_pad), jnp.float32),
        grid=grid,
        in_specs=in_specs,
        out_specs=pl.BlockSpec((tb, out_pad), lambda i: (i, 0)),
        compiler_params=pltpu.CompilerParams(
            dimension_semantics=("parallel",)),
        cost_estimate=pl.CostEstimate(
            flops=int(flops),
            transcendentals=int(transcendentals),
            bytes_accessed=int(bytes_accessed)),
    )(state, *ws, pk)

    return out[:B, :n_actions]


def pack_actor_params(params, weights_dtype=jnp.bfloat16):
    """Packs the canonical f32 params for the kernel.

    Returns (ws, pk, true_dims, n_actions):
      ws: 5 weights [in, out], every hidden/output dim zero-padded to a
          128-lane multiple, cast to `weights_dtype` (MXU operands).
      pk: (13, P) f32: rows [b1,g1,be1, b2,g2,be2, b3,g3,be3, b4,g4,be4, b5],
          each padded with zeros to P lanes (padding stays exact through LN).
      true_dims: (fc1, fc2, fc3, fc4) true widths, used for LN 1/d.
    """
    input_dim = int(params["w1"].shape[0])
    true_dims = tuple(int(params[f"w{i}"].shape[1]) for i in range(1, 5))
    n_actions = int(params["w5"].shape[1])

    dpads = [_round_up(max(d, 128), 128) for d in true_dims]
    out_pad = _round_up(max(n_actions, 128), 128)
    P = max(dpads + [out_pad])

    def pad_w(w, rpad, cpad):
        r, c = w.shape
        return jnp.pad(w, ((0, rpad - r), (0, cpad - c)))

    w1 = pad_w(params["w1"], input_dim, dpads[0])
    w2 = pad_w(params["w2"], dpads[0], dpads[1])
    w3 = pad_w(params["w3"], dpads[1], dpads[2])
    w4 = pad_w(params["w4"], dpads[2], dpads[3])
    w5 = pad_w(params["w5"], dpads[3], out_pad)
    ws = tuple(w.astype(weights_dtype) for w in (w1, w2, w3, w4, w5))

    rows = []
    for i in range(1, 5):
        for name in (f"b{i}", f"g{i}", f"be{i}"):
            v = params[name].reshape(-1).astype(jnp.float32)
            rows.append(jnp.pad(v, (0, P - v.shape[0])))
    b5 = params["b5"].reshape(-1).astype(jnp.float32)
    rows.append(jnp.pad(b5, (0, P - b5.shape[0])))
    pk = jnp.stack(rows, axis=0)                                   # (13, P)

    return ws, pk, true_dims, n_actions


# ----------------------------------------------------------------------------
# Parameter init (matches the shapes / uniform ranges of the PyTorch __init__)
# ----------------------------------------------------------------------------
def init_actor_params(key, input_dim, fc1, fc2, fc3, fc4, n_actions):
    """PyTorch stores Linear weight as [out, in]; the reference uses
    f = 1/sqrt(weight.size()[0]) = 1/sqrt(out_dim).  Weights here are stored
    pre-transposed as [in, out] for the kernel."""
    dims = [(input_dim, fc1), (fc1, fc2), (fc2, fc3), (fc3, fc4)]
    params = {}
    keys = jax.random.split(key, 10)
    ki = 0
    for layer, (din, dout) in enumerate(dims, start=1):
        f = 1.0 / np.sqrt(dout)
        params[f"w{layer}"] = jax.random.uniform(
            keys[ki], (din, dout), jnp.float32, -f, f)
        params[f"b{layer}"] = jax.random.uniform(
            keys[ki + 1], (1, dout), jnp.float32, -f, f)
        params[f"g{layer}"] = jnp.ones((1, dout), jnp.float32)   # LN gamma
        params[f"be{layer}"] = jnp.zeros((1, dout), jnp.float32)  # LN beta
        ki += 2
    f5 = 0.003
    params["w5"] = jax.random.uniform(
        keys[ki], (fc4, n_actions), jnp.float32, -f5, f5)
    params["b5"] = jax.random.uniform(
        keys[ki + 1], (1, n_actions), jnp.float32, -f5, f5)
    return params


# ----------------------------------------------------------------------------
# Pure-JAX reference (same bf16 MXU operand rounding as the kernel)
# ----------------------------------------------------------------------------
def reference_forward(state, params, weights_dtype=jnp.bfloat16):
    def ln_relu(h, g, b):
        m = jnp.mean(h, axis=-1, keepdims=True)
        v = jnp.mean((h - m) ** 2, axis=-1, keepdims=True)
        return jnp.maximum((h - m) / jnp.sqrt(v + LN_EPS) * g + b, 0.0)

    h = state
    for i in range(1, 5):
        w = params[f"w{i}"].astype(weights_dtype)
        z = jnp.dot(h.astype(weights_dtype), w,
                    preferred_element_type=jnp.float32) + params[f"b{i}"]
        h = ln_relu(z, params[f"g{i}"], params[f"be{i}"])
    w5 = params["w5"].astype(weights_dtype)
    mu = jnp.dot(h.astype(weights_dtype), w5,
                 preferred_element_type=jnp.float32) + params["b5"]
    return jnp.tanh(mu)


if __name__ == "__main__":
    # Small shapes consistent with the module: input_dims=(32,), fc sizes, actions.
    input_dim, fc1, fc2, fc3, fc4, n_actions = 32, 64, 64, 32, 32, 8

    key = jax.random.PRNGKey(0)
    pkey, xkey1, xkey2 = jax.random.split(key, 3)
    params = init_actor_params(pkey, input_dim, fc1, fc2, fc3, fc4, n_actions)
    ws, pk, true_dims, n_act = pack_actor_params(params, weights_dtype=jnp.bfloat16)

    # Case 1: tiny batch (single grid step, single slab).
    B1 = 8
    state1 = jax.random.normal(xkey1, (B1, input_dim), jnp.float32)
    out1 = jax.block_until_ready(
        actor_forward(state1, ws, pk, true_dims=true_dims, n_actions=n_act))
    ref1 = reference_forward(state1, params)
    np.testing.assert_allclose(np.asarray(out1), np.asarray(ref1),
                               rtol=1e-2, atol=1e-3)
    assert out1.shape == (B1, n_actions)

    # Case 2: non-multiple batch with the default tile (exercises the >=2-step
    # megacore split, batch padding, two-slab interleave, lane-dense slice).
    B2 = 200
    state2 = jax.random.normal(xkey2, (B2, input_dim), jnp.float32)
    out2 = jax.block_until_ready(
        actor_forward(state2, ws, pk, true_dims=true_dims, n_actions=n_act))
    ref2 = reference_forward(state2, params)
    np.testing.assert_allclose(np.asarray(out2), np.asarray(ref2),
                               rtol=1e-2, atol=1e-3)
    assert out2.shape == (B2, n_actions)

    # Case 3: explicit small tile -> multi-step parallel grid (grid=(4,)).
    out3 = jax.block_until_ready(
        actor_forward(state2, ws, pk, true_dims=true_dims, n_actions=n_act,
                      tile_b=64))
    np.testing.assert_allclose(np.asarray(out3), np.asarray(ref2),
                               rtol=1e-2, atol=1e-3)

    # TODO(synk): Adam optimizer state / checkpoint save-load are host-side
    # training utilities with no Pallas equivalent; only forward() is kernelized.
    print("KERNEL_OK")
</pallas_src>

<mosaic_0001>
module attributes {stable_mosaic.version = 11 : i64} {
  func.func @actor_kernel(%arg0: i32, %arg1: memref<8x32xf32, #tpu.memory_space<vmem>>, %arg2: memref<32x128xbf16, #tpu.memory_space<vmem>>, %arg3: memref<128x128xbf16, #tpu.memory_space<vmem>>, %arg4: memref<128x128xbf16, #tpu.memory_space<vmem>>, %arg5: memref<128x128xbf16, #tpu.memory_space<vmem>>, %arg6: memref<128x128xbf16, #tpu.memory_space<vmem>>, %arg7: memref<13x128xf32, #tpu.memory_space<vmem>>, %arg8: memref<8x128xf32, #tpu.memory_space<vmem>>) attributes {dimension_semantics = [#tpu.dimension_semantics<parallel>], iteration_bounds = array<i64: 1>, scalar_prefetch = 0 : i64, scratch_operands = 0 : i64, tpu.core_type = #tpu.core_type<tc>, window_params = [{transform_indices = @transform_0, window_bounds = array<i64: 8, 32>}, {pipeline_mode = #tpu.pipeline_mode<synchronous>, transform_indices = @transform_1, window_bounds = array<i64: 32, 128>}, {pipeline_mode = #tpu.pipeline_mode<synchronous>, transform_indices = @transform_2, window_bounds = array<i64: 128, 128>}, {pipeline_mode = #tpu.pipeline_mode<synchronous>, transform_indices = @transform_3, window_bounds = array<i64: 128, 128>}, {pipeline_mode = #tpu.pipeline_mode<synchronous>, transform_indices = @transform_4, window_bounds = array<i64: 128, 128>}, {pipeline_mode = #tpu.pipeline_mode<synchronous>, transform_indices = @transform_5, window_bounds = array<i64: 128, 128>}, {pipeline_mode = #tpu.pipeline_mode<synchronous>, transform_indices = @transform_6, window_bounds = array<i64: 13, 128>}, {transform_indices = @transform_7, window_bounds = array<i64: 8, 128>}]} {
    %c0 = arith.constant 0 : index
    %c0_0 = arith.constant 0 : index
    %0 = vector.load %arg7[%c0, %c0_0] : memref<13x128xf32, #tpu.memory_space<vmem>>, vector<1x128xf32>
    %c1 = arith.constant 1 : index
    %c0_1 = arith.constant 0 : index
    %1 = vector.load %arg7[%c1, %c0_1] : memref<13x128xf32, #tpu.memory_space<vmem>>, vector<1x128xf32>
    %c2 = arith.constant 2 : index
    %c0_2 = arith.constant 0 : index
    %2 = vector.load %arg7[%c2, %c0_2] : memref<13x128xf32, #tpu.memory_space<vmem>>, vector<1x128xf32>
    %c3 = arith.constant 3 : index
    %c0_3 = arith.constant 0 : index
    %3 = vector.load %arg7[%c3, %c0_3] : memref<13x128xf32, #tpu.memory_space<vmem>>, vector<1x128xf32>
    %c4 = arith.constant 4 : index
    %c0_4 = arith.constant 0 : index
    %4 = vector.load %arg7[%c4, %c0_4] : memref<13x128xf32, #tpu.memory_space<vmem>>, vector<1x128xf32>
    %c5 = arith.constant 5 : index
    %c0_5 = arith.constant 0 : index
    %5 = vector.load %arg7[%c5, %c0_5] : memref<13x128xf32, #tpu.memory_space<vmem>>, vector<1x128xf32>
    %c6 = arith.constant 6 : index
    %c0_6 = arith.constant 0 : index
    %6 = vector.load %arg7[%c6, %c0_6] : memref<13x128xf32, #tpu.memory_space<vmem>>, vector<1x128xf32>
    %c7 = arith.constant 7 : index
    %c0_7 = arith.constant 0 : index
    %7 = vector.load %arg7[%c7, %c0_7] : memref<13x128xf32, #tpu.memory_space<vmem>>, vector<1x128xf32>
    %c8 = arith.constant 8 : index
    %c0_8 = arith.constant 0 : index
    %8 = vector.load %arg7[%c8, %c0_8] : memref<13x128xf32, #tpu.memory_space<vmem>>, vector<1x128xf32>
    %c9 = arith.constant 9 : index
    %c0_9 = arith.constant 0 : index
    %9 = vector.load %arg7[%c9, %c0_9] : memref<13x128xf32, #tpu.memory_space<vmem>>, vector<1x128xf32>
    %c10 = arith.constant 10 : index
    %c0_10 = arith.constant 0 : index
    %10 = vector.load %arg7[%c10, %c0_10] : memref<13x128xf32, #tpu.memory_space<vmem>>, vector<1x128xf32>
    %c11 = arith.constant 11 : index
    %c0_11 = arith.constant 0 : index
    %11 = vector.load %arg7[%c11, %c0_11] : memref<13x128xf32, #tpu.memory_space<vmem>>, vector<1x128xf32>
    %c12 = arith.constant 12 : index
    %c0_12 = arith.constant 0 : index
    %12 = vector.load %arg7[%c12, %c0_12] : memref<13x128xf32, #tpu.memory_space<vmem>>, vector<1x128xf32>
    %c0_13 = arith.constant 0 : index
    %c0_14 = arith.constant 0 : index
    %13 = vector.load %arg1[%c0_13, %c0_14] : memref<8x32xf32, #tpu.memory_space<vmem>>, vector<8x32xf32>
    %14 = arith.truncf %13 : vector<8x32xf32> to vector<8x32xbf16>
    %c0_15 = arith.constant 0 : index
    %c0_16 = arith.constant 0 : index
    %15 = vector.load %arg2[%c0_15, %c0_16] : memref<32x128xbf16, #tpu.memory_space<vmem>>, vector<32x128xbf16>
    %cst = arith.constant dense<0.000000e+00> : vector<8x128xf32>
    %16 = tpu.matmul %14, %15, %cst {dimension_numbers = #tpu.dot_dimension_numbers<[1], [0], [0], [1], [0, 0, 1, 1], [], []>} : vector<8x32xbf16>, vector<32x128xbf16>, vector<8x128xf32> -> vector<8x128xf32>
    %17 = vector.broadcast %0 : vector<1x128xf32> to vector<8x128xf32>
    %18 = arith.addf %16, %17 : vector<8x128xf32>
    %cst_17 = arith.constant dense<0.000000e+00> : vector<8xf32>
    %19 = vector.multi_reduction <add>, %18, %cst_17 [1] : vector<8x128xf32> to vector<8xf32>
    %20 = vector.shape_cast %19 : vector<8xf32> to vector<8x1xf32>
    %21 = arith.mulf %18, %18 : vector<8x128xf32>
    %cst_18 = arith.constant dense<0.000000e+00> : vector<8xf32>
    %22 = vector.multi_reduction <add>, %21, %cst_18 [1] : vector<8x128xf32> to vector<8xf32>
    %23 = vector.shape_cast %22 : vector<8xf32> to vector<8x1xf32>
    %cst_19 = arith.constant 1.562500e-02 : f32
    %24 = vector.broadcast %cst_19 : f32 to vector<8x1xf32>
    %25 = arith.mulf %20, %24 : vector<8x1xf32>
    %cst_20 = arith.constant 1.562500e-02 : f32
    %26 = vector.broadcast %cst_20 : f32 to vector<8x1xf32>
    %27 = arith.mulf %23, %26 : vector<8x1xf32>
    %28 = arith.mulf %25, %25 : vector<8x1xf32>
    %29 = arith.subf %27, %28 : vector<8x1xf32>
    %cst_21 = arith.constant 0.000000e+00 : f32
    %30 = vector.broadcast %cst_21 : f32 to vector<8x1xf32>
    %31 = arith.maximumf %29, %30 : vector<8x1xf32>
    %32 = vector.broadcast %25 : vector<8x1xf32> to vector<8x128xf32>
    %33 = arith.subf %18, %32 : vector<8x128xf32>
    %cst_22 = arith.constant 9.99999974E-6 : f32
    %34 = vector.broadcast %cst_22 : f32 to vector<8x1xf32>
    %35 = arith.addf %31, %34 : vector<8x1xf32>
    %36 = math.rsqrt %35 : vector<8x1xf32>
    %37 = vector.broadcast %36 : vector<8x1xf32> to vector<8x128xf32>
    %38 = arith.mulf %33, %37 : vector<8x128xf32>
    %39 = vector.broadcast %1 : vector<1x128xf32> to vector<8x128xf32>
    %40 = arith.mulf %38, %39 : vector<8x128xf32>
    %41 = vector.broadcast %2 : vector<1x128xf32> to vector<8x128xf32>
    %42 = arith.addf %40, %41 : vector<8x128xf32>
    %cst_23 = arith.constant 0.000000e+00 : f32
    %43 = vector.broadcast %cst_23 : f32 to vector<8x128xf32>
    %44 = arith.maximumf %42, %43 : vector<8x128xf32>
    %45 = arith.truncf %44 : vector<8x128xf32> to vector<8x128xbf16>
    %c0_24 = arith.constant 0 : index
    %c0_25 = arith.constant 0 : index
    %46 = vector.load %arg3[%c0_24, %c0_25] : memref<128x128xbf16, #tpu.memory_space<vmem>>, vector<128x128xbf16>
    %cst_26 = arith.constant dense<0.000000e+00> : vector<8x128xf32>
    %47 = tpu.matmul %45, %46, %cst_26 {dimension_numbers = #tpu.dot_dimension_numbers<[1], [0], [0], [1], [0, 0, 1, 1], [], []>} : vector<8x128xbf16>, vector<128x128xbf16>, vector<8x128xf32> -> vector<8x128xf32>
    %48 = vector.broadcast %3 : vector<1x128xf32> to vector<8x128xf32>
    %49 = arith.addf %47, %48 : vector<8x128xf32>
    %cst_27 = arith.constant dense<0.000000e+00> : vector<8xf32>
    %50 = vector.multi_reduction <add>, %49, %cst_27 [1] : vector<8x128xf32> to vector<8xf32>
    %51 = vector.shape_cast %50 : vector<8xf32> to vector<8x1xf32>
    %52 = arith.mulf %49, %49 : vector<8x128xf32>
    %cst_28 = arith.constant dense<0.000000e+00> : vector<8xf32>
    %53 = vector.multi_reduction <add>, %52, %cst_28 [1] : vector<8x128xf32> to vector<8xf32>
    %54 = vector.shape_cast %53 : vector<8xf32> to vector<8x1xf32>
    %cst_29 = arith.constant 1.562500e-02 : f32
    %55 = vector.broadcast %cst_29 : f32 to vector<8x1xf32>
    %56 = arith.mulf %51, %55 : vector<8x1xf32>
    %cst_30 = arith.constant 1.562500e-02 : f32
    %57 = vector.broadcast %cst_30 : f32 to vector<8x1xf32>
    %58 = arith.mulf %54, %57 : vector<8x1xf32>
    %59 = arith.mulf %56, %56 : vector<8x1xf32>
    %60 = arith.subf %58, %59 : vector<8x1xf32>
    %cst_31 = arith.constant 0.000000e+00 : f32
    %61 = vector.broadcast %cst_31 : f32 to vector<8x1xf32>
    %62 = arith.maximumf %60, %61 : vector<8x1xf32>
    %63 = vector.broadcast %56 : vector<8x1xf32> to vector<8x128xf32>
    %64 = arith.subf %49, %63 : vector<8x128xf32>
    %cst_32 = arith.constant 9.99999974E-6 : f32
    %65 = vector.broadcast %cst_32 : f32 to vector<8x1xf32>
    %66 = arith.addf %62, %65 : vector<8x1xf32>
    %67 = math.rsqrt %66 : vector<8x1xf32>
    %68 = vector.broadcast %67 : vector<8x1xf32> to vector<8x128xf32>
    %69 = arith.mulf %64, %68 : vector<8x128xf32>
    %70 = vector.broadcast %4 : vector<1x128xf32> to vector<8x128xf32>
    %71 = arith.mulf %69, %70 : vector<8x128xf32>
    %72 = vector.broadcast %5 : vector<1x128xf32> to vector<8x128xf32>
    %73 = arith.addf %71, %72 : vector<8x128xf32>
    %cst_33 = arith.constant 0.000000e+00 : f32
    %74 = vector.broadcast %cst_33 : f32 to vector<8x128xf32>
    %75 = arith.maximumf %73, %74 : vector<8x128xf32>
    %76 = arith.truncf %75 : vector<8x128xf32> to vector<8x128xbf16>
    %c0_34 = arith.constant 0 : index
    %c0_35 = arith.constant 0 : index
    %77 = vector.load %arg4[%c0_34, %c0_35] : memref<128x128xbf16, #tpu.memory_space<vmem>>, vector<128x128xbf16>
    %cst_36 = arith.constant dense<0.000000e+00> : vector<8x128xf32>
    %78 = tpu.matmul %76, %77, %cst_36 {dimension_numbers = #tpu.dot_dimension_numbers<[1], [0], [0], [1], [0, 0, 1, 1], [], []>} : vector<8x128xbf16>, vector<128x128xbf16>, vector<8x128xf32> -> vector<8x128xf32>
    %79 = vector.broadcast %6 : vector<1x128xf32> to vector<8x128xf32>
    %80 = arith.addf %78, %79 : vector<8x128xf32>
    %cst_37 = arith.constant dense<0.000000e+00> : vector<8xf32>
    %81 = vector.multi_reduction <add>, %80, %cst_37 [1] : vector<8x128xf32> to vector<8xf32>
    %82 = vector.shape_cast %81 : vector<8xf32> to vector<8x1xf32>
    %83 = arith.mulf %80, %80 : vector<8x128xf32>
    %cst_38 = arith.constant dense<0.000000e+00> : vector<8xf32>
    %84 = vector.multi_reduction <add>, %83, %cst_38 [1] : vector<8x128xf32> to vector<8xf32>
    %85 = vector.shape_cast %84 : vector<8xf32> to vector<8x1xf32>
    %cst_39 = arith.constant 3.125000e-02 : f32
    %86 = vector.broadcast %cst_39 : f32 to vector<8x1xf32>
    %87 = arith.mulf %82, %86 : vector<8x1xf32>
    %cst_40 = arith.constant 3.125000e-02 : f32
    %88 = vector.broadcast %cst_40 : f32 to vector<8x1xf32>
    %89 = arith.mulf %85, %88 : vector<8x1xf32>
    %90 = arith.mulf %87, %87 : vector<8x1xf32>
    %91 = arith.subf %89, %90 : vector<8x1xf32>
    %cst_41 = arith.constant 0.000000e+00 : f32
    %92 = vector.broadcast %cst_41 : f32 to vector<8x1xf32>
    %93 = arith.maximumf %91, %92 : vector<8x1xf32>
    %94 = vector.broadcast %87 : vector<8x1xf32> to vector<8x128xf32>
    %95 = arith.subf %80, %94 : vector<8x128xf32>
    %cst_42 = arith.constant 9.99999974E-6 : f32
    %96 = vector.broadcast %cst_42 : f32 to vector<8x1xf32>
    %97 = arith.addf %93, %96 : vector<8x1xf32>
    %98 = math.rsqrt %97 : vector<8x1xf32>
    %99 = vector.broadcast %98 : vector<8x1xf32> to vector<8x128xf32>
    %100 = arith.mulf %95, %99 : vector<8x128xf32>
    %101 = vector.broadcast %7 : vector<1x128xf32> to vector<8x128xf32>
    %102 = arith.mulf %100, %101 : vector<8x128xf32>
    %103 = vector.broadcast %8 : vector<1x128xf32> to vector<8x128xf32>
    %104 = arith.addf %102, %103 : vector<8x128xf32>
    %cst_43 = arith.constant 0.000000e+00 : f32
    %105 = vector.broadcast %cst_43 : f32 to vector<8x128xf32>
    %106 = arith.maximumf %104, %105 : vector<8x128xf32>
    %107 = arith.truncf %106 : vector<8x128xf32> to vector<8x128xbf16>
    %c0_44 = arith.constant 0 : index
    %c0_45 = arith.constant 0 : index
    %108 = vector.load %arg5[%c0_44, %c0_45] : memref<128x128xbf16, #tpu.memory_space<vmem>>, vector<128x128xbf16>
    %cst_46 = arith.constant dense<0.000000e+00> : vector<8x128xf32>
    %109 = tpu.matmul %107, %108, %cst_46 {dimension_numbers = #tpu.dot_dimension_numbers<[1], [0], [0], [1], [0, 0, 1, 1], [], []>} : vector<8x128xbf16>, vector<128x128xbf16>, vector<8x128xf32> -> vector<8x128xf32>
    %110 = vector.broadcast %9 : vector<1x128xf32> to vector<8x128xf32>
    %111 = arith.addf %109, %110 : vector<8x128xf32>
    %cst_47 = arith.constant dense<0.000000e+00> : vector<8xf32>
    %112 = vector.multi_reduction <add>, %111, %cst_47 [1] : vector<8x128xf32> to vector<8xf32>
    %113 = vector.shape_cast %112 : vector<8xf32> to vector<8x1xf32>
    %114 = arith.mulf %111, %111 : vector<8x128xf32>
    %cst_48 = arith.constant dense<0.000000e+00> : vector<8xf32>
    %115 = vector.multi_reduction <add>, %114, %cst_48 [1] : vector<8x128xf32> to vector<8xf32>
    %116 = vector.shape_cast %115 : vector<8xf32> to vector<8x1xf32>
    %cst_49 = arith.constant 3.125000e-02 : f32
    %117 = vector.broadcast %cst_49 : f32 to vector<8x1xf32>
    %118 = arith.mulf %113, %117 : vector<8x1xf32>
    %cst_50 = arith.constant 3.125000e-02 : f32
    %119 = vector.broadcast %cst_50 : f32 to vector<8x1xf32>
    %120 = arith.mulf %116, %119 : vector<8x1xf32>
    %121 = arith.mulf %118, %118 : vector<8x1xf32>
    %122 = arith.subf %120, %121 : vector<8x1xf32>
    %cst_51 = arith.constant 0.000000e+00 : f32
    %123 = vector.broadcast %cst_51 : f32 to vector<8x1xf32>
    %124 = arith.maximumf %122, %123 : vector<8x1xf32>
    %125 = vector.broadcast %118 : vector<8x1xf32> to vector<8x128xf32>
    %126 = arith.subf %111, %125 : vector<8x128xf32>
    %cst_52 = arith.constant 9.99999974E-6 : f32
    %127 = vector.broadcast %cst_52 : f32 to vector<8x1xf32>
    %128 = arith.addf %124, %127 : vector<8x1xf32>
    %129 = math.rsqrt %128 : vector<8x1xf32>
    %130 = vector.broadcast %129 : vector<8x1xf32> to vector<8x128xf32>
    %131 = arith.mulf %126, %130 : vector<8x128xf32>
    %132 = vector.broadcast %10 : vector<1x128xf32> to vector<8x128xf32>
    %133 = arith.mulf %131, %132 : vector<8x128xf32>
    %134 = vector.broadcast %11 : vector<1x128xf32> to vector<8x128xf32>
    %135 = arith.addf %133, %134 : vector<8x128xf32>
    %cst_53 = arith.constant 0.000000e+00 : f32
    %136 = vector.broadcast %cst_53 : f32 to vector<8x128xf32>
    %137 = arith.maximumf %135, %136 : vector<8x128xf32>
    %138 = arith.truncf %137 : vector<8x128xf32> to vector<8x128xbf16>
    %c0_54 = arith.constant 0 : index
    %c0_55 = arith.constant 0 : index
    %139 = vector.load %arg6[%c0_54, %c0_55] : memref<128x128xbf16, #tpu.memory_space<vmem>>, vector<128x128xbf16>
    %cst_56 = arith.constant dense<0.000000e+00> : vector<8x128xf32>
    %140 = tpu.matmul %138, %139, %cst_56 {dimension_numbers = #tpu.dot_dimension_numbers<[1], [0], [0], [1], [0, 0, 1, 1], [], []>} : vector<8x128xbf16>, vector<128x128xbf16>, vector<8x128xf32> -> vector<8x128xf32>
    %141 = vector.broadcast %12 : vector<1x128xf32> to vector<8x128xf32>
    %142 = arith.addf %140, %141 : vector<8x128xf32>
    %143 = math.tanh %142 : vector<8x128xf32>
    %c0_57 = arith.constant 0 : index
    %c0_58 = arith.constant 0 : index
    %144 = vector.load %arg8[%c0_57, %c0_58] : memref<8x128xf32, #tpu.memory_space<vmem>>, vector<8x128xf32>
    tpu.vector_store %arg8[%c0_57, %c0_58], %143 {strides = array<i32>} : memref<8x128xf32, #tpu.memory_space<vmem>>, vector<8x128xf32>,
    return
  }
  func.func @transform_0(%arg0: i32) -> (i32, i32) {
    %c0_i32 = arith.constant 0 : i32
    %c0_i32_0 = arith.constant 0 : i32
    return %arg0, %c0_i32 : i32, i32
  }
  func.func @transform_1(%arg0: i32) -> (i32, i32) {
    %c0_i32 = arith.constant 0 : i32
    %c0_i32_0 = arith.constant 0 : i32
    %c0_i32_1 = arith.constant 0 : i32
    return %c0_i32, %c0_i32_0 : i32, i32
  }
  func.func @transform_2(%arg0: i32) -> (i32, i32) {
    %c0_i32 = arith.constant 0 : i32
    %c0_i32_0 = arith.constant 0 : i32
    %c0_i32_1 = arith.constant 0 : i32
    return %c0_i32, %c0_i32_0 : i32, i32
  }
  func.func @transform_3(%arg0: i32) -> (i32, i32) {
    %c0_i32 = arith.constant 0 : i32
    %c0_i32_0 = arith.constant 0 : i32
    %c0_i32_1 = arith.constant 0 : i32
    return %c0_i32, %c0_i32_0 : i32, i32
  }
  func.func @transform_4(%arg0: i32) -> (i32, i32) {
    %c0_i32 = arith.constant 0 : i32
    %c0_i32_0 = arith.constant 0 : i32
    %c0_i32_1 = arith.constant 0 : i32
    return %c0_i32, %c0_i32_0 : i32, i32
  }
  func.func @transform_5(%arg0: i32) -> (i32, i32) {
    %c0_i32 = arith.constant 0 : i32
    %c0_i32_0 = arith.constant 0 : i32
    %c0_i32_1 = arith.constant 0 : i32
    return %c0_i32, %c0_i32_0 : i32, i32
  }
  func.func @transform_6(%arg0: i32) -> (i32, i32) {
    %c0_i32 = arith.constant 0 : i32
    %c0_i32_0 = arith.constant 0 : i32
    %c0_i32_1 = arith.constant 0 : i32
    return %c0_i32, %c0_i32_0 : i32, i32
  }
  func.func @transform_7(%arg0: i32) -> (i32, i32) {
    %c0_i32 = arith.constant 0 : i32
    %c0_i32_0 = arith.constant 0 : i32
    return %arg0, %c0_i32 : i32, i32
  }
}

</mosaic_0001>

<llo_original>
// kernel: actor_forward.1
$region0: #{actor_forward.1}
  #allocation0 [shape = 'u32[]', space=smem, size = 0x4, offset = 0x4, fixed_abs, tag = 'smem constant byte address 0x4 - core index']
  #allocation1 [shape = 'u32[72,128]{1,0:T(1,128)}', space=vmem, size = 0x9000, scoped, tag = 'internal scratch']
  %s0 = inlined_call_operand.hbm [shape: f32[8,32], index: 0, kind: input, shape index: {}]
  %s1 = inlined_call_operand.hbm [shape: bf16[32,128], index: 1, kind: input, shape index: {}]
  %s2 = inlined_call_operand.hbm [shape: bf16[128,128], index: 2, kind: input, shape index: {}]
  %s3 = inlined_call_operand.hbm [shape: bf16[128,128], index: 3, kind: input, shape index: {}]
  %s4 = inlined_call_operand.hbm [shape: bf16[128,128], index: 4, kind: input, shape index: {}]
  %s5 = inlined_call_operand.hbm [shape: bf16[128,128], index: 5, kind: input, shape index: {}]
  %s6 = inlined_call_operand.hbm [shape: f32[13,128], index: 6, kind: input, shape index: {}]
  %s7 = inlined_call_operand.hbm [shape: f32[8,128], index: 7, kind: output, shape index: {}]
  %s8 = sld [smem:[#allocation0]]
  $region66: #{actor_forward.1} parent=0
    _
  %s10 = ssub.s32 1, %s8
  %s11 = scalar_select 0, %s10, %s8
  $region1: #{actor_forward.1} parent=0
    #allocation2 [shape = 'u8[4096]{0}', space=vmem, size = 0x1000, scoped, tag = 'input window, operand 0, single buffered']
    #allocation3 [shape = 's32[1]{0}', space=sflag, size = 0x4, scoped, tag = 'scoped memory for actor_forward.1']
    #allocation4 [shape = 's32[1]{0}', space=sflag, size = 0x4, scoped, tag = 'scoped memory for actor_forward.1']
    #allocation5 [shape = 'u8[8192]{0}', space=vmem, size = 0x2000, scoped, tag = 'input window, operand 1, single buffered']
    #allocation6 [shape = 's32[1]{0}', space=sflag, size = 0x4, scoped, tag = 'scoped memory for actor_forward.1']
    #allocation7 [shape = 'u8[32768]{0}', space=vmem, size = 0x8000, scoped, tag = 'input window, operand 2, single buffered']
    #allocation8 [shape = 'u8[32768]{0}', space=vmem, size = 0x8000, scoped, tag = 'input window, operand 3, single buffered']
    #allocation9 [shape = 's32[1]{0}', space=sflag, size = 0x4, scoped, tag = 'scoped memory for actor_forward.1']
    #allocation10 [shape = 'u8[32768]{0}', space=vmem, size = 0x8000, scoped, tag = 'input window, operand 4, single buffered']
    #allocation11 [shape = 'u8[32768]{0}', space=vmem, size = 0x8000, scoped, tag = 'input window, operand 5, single buffered']
    #allocation12 [shape = 's32[1]{0}', space=sflag, size = 0x4, scoped, tag = 'scoped memory for actor_forward.1']
    #allocation13 [shape = 'u8[8192]{0}', space=vmem, size = 0x2000, scoped, tag = 'input window, operand 6, single buffered']
    #allocation14 [shape = 'u8[4096]{0}', space=vmem, size = 0x1000, scoped, tag = 'output window, operand 0, single buffered']
    %12 = vsyncpa [#allocation3], 0
    %13 = vsyncpa [#allocation6], 0
    %14 = vsyncpa [#allocation9], 0
    %15 = vsyncpa [#allocation12], 0
    %16 = vsyncpa [#allocation4], 0
    // Predicated region
    $region2: #{actor_forward.1} parent=1 // pred_check
      _
    $region3: #{actor_forward.1} parent=1 // pred_check_branch
      %18 = sbr.rel (0) target = $region5
    $region4: #{actor_forward.1} parent=1 // pred_region
      %20 = vsyncadd [#allocation3], 0
      %s22 = sshll.u32 %s0, 4
      %s23 = int_to_ptr.hbm [resolvable:$true] %s22
      %s24 = sshll.u32 [#allocation2], 4
      %s25 = int_to_ptr.vmem [resolvable:$true] %s24
      %27 = dma.hbm_to_vmem [thread:$0]  %s23, 128, %s25, [#allocation3]
    $region5: #{actor_forward.1} parent=1 // pred_fallthru
      _
    // Predicated region
    $region6: #{actor_forward.1} parent=1 // pred_check
      _
    $region7: #{actor_forward.1} parent=1 // pred_check_branch
      %29 = sbr.rel (0) target = $region9
    $region8: #{actor_forward.1} parent=1 // pred_region
      %31 = vsyncadd [#allocation6], 0
      %s32 = sshll.u32 %s1, 4
      %s33 = int_to_ptr.hbm [resolvable:$true] %s32
      %s34 = sshll.u32 [#allocation5], 4
      %s35 = int_to_ptr.vmem [resolvable:$true] %s34
      %40 = dma.hbm_to_vmem [thread:$0]  %s33, 256, %s35, [#allocation6], 64, 64, 4
    $region9: #{actor_forward.1} parent=1 // pred_fallthru
      _
    // Predicated region
    $region10: #{actor_forward.1} parent=1 // pred_check
      _
    $region11: #{actor_forward.1} parent=1 // pred_check_branch
      %42 = sbr.rel (0) target = $region13
    $region12: #{actor_forward.1} parent=1 // pred_region
      %44 = vsyncadd [#allocation6], 0
      %s45 = sshll.u32 %s2, 4
      %s46 = int_to_ptr.hbm [resolvable:$true] %s45
      %s47 = sshll.u32 [#allocation7], 4
      %s48 = int_to_ptr.vmem [resolvable:$true] %s47
      %53 = dma.hbm_to_vmem [thread:$0]  %s46, 1024, %s48, [#allocation6], 64, 64, 4
    $region13: #{actor_forward.1} parent=1 // pred_fallthru
      _
    // Predicated region
    $region14: #{actor_forward.1} parent=1 // pred_check
      _
    $region15: #{actor_forward.1} parent=1 // pred_check_branch
      %55 = sbr.rel (0) target = $region17
    $region16: #{actor_forward.1} parent=1 // pred_region
      %57 = vsyncadd [#allocation9], 0
      %s58 = sshll.u32 %s3, 4
      %s59 = int_to_ptr.hbm [resolvable:$true] %s58
      %s60 = sshll.u32 [#allocation8], 4
      %s61 = int_to_ptr.vmem [resolvable:$true] %s60
      %66 = dma.hbm_to_vmem [thread:$0]  %s59, 1024, %s61, [#allocation9], 64, 64, 4
    $region17: #{actor_forward.1} parent=1 // pred_fallthru
      _
    // Predicated region
    $region18: #{actor_forward.1} parent=1 // pred_check
      _
    $region19: #{actor_forward.1} parent=1 // pred_check_branch
      %68 = sbr.rel (0) target = $region21
    $region20: #{actor_forward.1} parent=1 // pred_region
      %70 = vsyncadd [#allocation9], 0
      %s71 = sshll.u32 %s4, 4
      %s72 = int_to_ptr.hbm [resolvable:$true] %s71
      %s73 = sshll.u32 [#allocation10], 4
      %s74 = int_to_ptr.vmem [resolvable:$true] %s73
      %79 = dma.hbm_to_vmem [thread:$0]  %s72, 1024, %s74, [#allocation9], 64, 64, 4
    $region21: #{actor_forward.1} parent=1 // pred_fallthru
      _
    // Predicated region
    $region22: #{actor_forward.1} parent=1 // pred_check
      _
    $region23: #{actor_forward.1} parent=1 // pred_check_branch
      %81 = sbr.rel (0) target = $region25
    $region24: #{actor_forward.1} parent=1 // pred_region
      %83 = vsyncadd [#allocation12], 0
      %s84 = sshll.u32 %s5, 4
      %s85 = int_to_ptr.hbm [resolvable:$true] %s84
      %s86 = sshll.u32 [#allocation11], 4
      %s87 = int_to_ptr.vmem [resolvable:$true] %s86
      %92 = dma.hbm_to_vmem [thread:$0]  %s85, 1024, %s87, [#allocation12], 64, 64, 4
    $region25: #{actor_forward.1} parent=1 // pred_fallthru
      _
    // Predicated region
    $region26: #{actor_forward.1} parent=1 // pred_check
      _
    $region27: #{actor_forward.1} parent=1 // pred_check_branch
      %94 = sbr.rel (0) target = $region29
    $region28: #{actor_forward.1} parent=1 // pred_region
      %96 = vsyncadd [#allocation12], 0
      %s97 = sshll.u32 %s6, 4
      %s98 = int_to_ptr.hbm [resolvable:$true] %s97
      %s99 = sshll.u32 [#allocation13], 4
      %s100 = int_to_ptr.vmem [resolvable:$true] %s99
      %105 = dma.hbm_to_vmem [thread:$0]  %s98, 256, %s100, [#allocation12], 128, 128, 8
    $region29: #{actor_forward.1} parent=1 // pred_fallthru
      _
    // Predicated region
    $region30: #{actor_forward.1} parent=1 // pred_check
      _
    $region31: #{actor_forward.1} parent=1 // pred_check_branch
      %107 = sbr.rel (0) target = $region33
    $region32: #{actor_forward.1} parent=1 // pred_region
      %109 = dma.done [#allocation3], 128
    $region33: #{actor_forward.1} parent=1 // pred_fallthru
      _
    // Predicated region
    $region34: #{actor_forward.1} parent=1 // pred_check
      _
    $region35: #{actor_forward.1} parent=1 // pred_check_branch
      %111 = sbr.rel (0) target = $region37
    $region36: #{actor_forward.1} parent=1 // pred_region
      %113 = dma.done [#allocation6], 256
    $region37: #{actor_forward.1} parent=1 // pred_fallthru
      _
    // Predicated region
    $region38: #{actor_forward.1} parent=1 // pred_check
      _
    $region39: #{actor_forward.1} parent=1 // pred_check_branch
      %115 = sbr.rel (0) target = $region41
    $region40: #{actor_forward.1} parent=1 // pred_region
      %117 = dma.done [#allocation6], 1024
    $region41: #{actor_forward.1} parent=1 // pred_fallthru
      _
    // Predicated region
    $region42: #{actor_forward.1} parent=1 // pred_check
      _
    $region43: #{actor_forward.1} parent=1 // pred_check_branch
      %119 = sbr.rel (0) target = $region45
    $region44: #{actor_forward.1} parent=1 // pred_region
      %121 = dma.done [#allocation9], 1024
    $region45: #{actor_forward.1} parent=1 // pred_fallthru
      _
    // Predicated region
    $region46: #{actor_forward.1} parent=1 // pred_check
      _
    $region47: #{actor_forward.1} parent=1 // pred_check_branch
      %123 = sbr.rel (0) target = $region49
    $region48: #{actor_forward.1} parent=1 // pred_region
      %125 = dma.done [#allocation9], 1024
    $region49: #{actor_forward.1} parent=1 // pred_fallthru
      _
    // Predicated region
    $region50: #{actor_forward.1} parent=1 // pred_check
      _
    $region51: #{actor_forward.1} parent=1 // pred_check_branch
      %127 = sbr.rel (0) target = $region53
    $region52: #{actor_forward.1} parent=1 // pred_region
      %129 = dma.done [#allocation12], 1024
    $region53: #{actor_forward.1} parent=1 // pred_fallthru
      _
    // Predicated region
    $region54: #{actor_forward.1} parent=1 // pred_check
      _
    $region55: #{actor_forward.1} parent=1 // pred_check_branch
      %131 = sbr.rel (0) target = $region57
    $region56: #{actor_forward.1} parent=1 // pred_region
      %133 = dma.done [#allocation12], 256
    $region57: #{actor_forward.1} parent=1 // pred_fallthru
      _
    %v135 = vld [vmem:[#allocation13] sm:$0x1]
    %v136 = vld [vmem:[#allocation13 + $0x1] sm:$0x1]
    %v137 = vld [vmem:[#allocation13 + $0x2] sm:$0x1]
    %v138 = vld [vmem:[#allocation13 + $0x3] sm:$0x1]
    %v139 = vld [vmem:[#allocation13 + $0x4] sm:$0x1]
    %v140 = vld [vmem:[#allocation13 + $0x5] sm:$0x1]
    %v141 = vld [vmem:[#allocation13 + $0x6] sm:$0x1]
    %v142 = vld [vmem:[#allocation13 + $0x7] sm:$0x1]
    %v143 = vld [vmem:[#allocation13 + $0x8] sm:$0x1]
    %v144 = vld [vmem:[#allocation13 + $0x9] sm:$0x1]
    %v145 = vld [vmem:[#allocation13 + $0xa] sm:$0x1]
    %v146 = vld [vmem:[#allocation13 + $0xb] sm:$0x1]
    %v147 = vld [vmem:[#allocation13 + $0xc] sm:$0x1]
    %v148 = vld [vmem:[#allocation2] sm:$0xff]
    %v149 = vpack.c.bf16 %v148, %v148
    %v150 = vld [vmem:[#allocation5] sm:$0xf]
    %v151 = vld [vmem:[#allocation5 + $0x4] sm:$0xf]
    %v152 = vld [vmem:[#allocation5 + $0x8] sm:$0xf]
    %v153 = vld [vmem:[#allocation5 + $0xc] sm:$0xf]
    %v154 = vperm.slane %v135, 0
    %v159 = vunpack.c.l.b16 %v150
    %v160 = vunpack.c.l.b16 %v151
    %v161 = vunpack.c.l.b16 %v152
    %v162 = vunpack.c.l.b16 %v153
    %v163 = vpack.c.b16 %v160, %v159
    %v164 = vpack.c.b16 %v162, %v161
    %vm167 = vcmask 261120
    %v169 = vsel %vm167, %v149, 0
    %171 = vmatpush.bf16.msra.mxu0 0
    %172 = vmatpush.bf16.msra.mxu0 0
    %173 = vmatpush.bf16.msra.mxu0 0
    %174 = vmatpush.bf16.msra.mxu0 0
    %175 = vmatpush.bf16.msra.mxu0 0
    %176 = vmatpush.bf16.msra.mxu0 0
    %177 = vmatpush.bf16.msra.mxu0 %v164
    %178 = vmatpush.bf16.msra.mxu0 %v163
    %179 = vmatmul.bf16.gmra.mxu0 %v169
    %v180 = vpop.f32.mrf.mxu0
    %v181 = vadd.f32 %v154, %v180
    %v182 = vpop.f32.mrf.mxu0
    %183 = vdwg.mxu0
    %184 = vadd.xlane.f32.xlu0 %v181
    %v185 = vpop.xlane.xlu0 %184
    %v186 = vmul.f32 %v181, %v181
    %187 = vadd.xlane.f32.xlu0 %v186
    %v188 = vpop.xlane.xlu0 %187
    %v189 = vmul.f32 %v185, 0.015625
    %v190 = vmul.f32 %v188, 0.015625
    %v191 = vmul.f32 %v189, %v189
    %v192 = vsub.f32 %v190, %v191
    %v193 = vmax.f32 %v192, 0.0
    %v194 = vsub.f32 %v181, %v189
    %v195 = vadd.f32 %v193, 1e-05
    %v196 = vrsqrt.pop %v195
    %v197 = vmul.f32 %v196, %v195
    %v198 = vmul.f32 %v197, %v196
    %v199 = vmul.f32 0.5, %v198
    %v200 = vsub.f32 1.5, %v199
    %v201 = vmul.f32 %v196, %v200
    %vm202 = vweird.f32 %v195
    %vm203 = vweird.f32 %v196
    %vm204 = vmor %vm202, %vm203
    %v205 = vsel %vm204, %v196, %v201
    %v206 = vmul.f32 %v194, %v205
    %v207 = vperm.slane %v136, 0
    %v208 = vmul.f32 %v206, %v207
    %v209 = vperm.slane %v137, 0
    %v210 = vadd.f32 %v208, %v209
    %v211 = vmax.f32 %v210, 0.0
    %v212 = vpack.c.bf16 %v211, %v211
    %v213 = vld [vmem:[#allocation7] sm:$0xf]
    %v214 = vld [vmem:[#allocation7 + $0x4] sm:$0xf]
    %v215 = vld [vmem:[#allocation7 + $0x8] sm:$0xf]
    %v216 = vld [vmem:[#allocation7 + $0xc] sm:$0xf]
    %v217 = vld [vmem:[#allocation7 + $0x10] sm:$0xf]
    %v218 = vld [vmem:[#allocation7 + $0x14] sm:$0xf]
    %v219 = vld [vmem:[#allocation7 + $0x18] sm:$0xf]
    %v220 = vld [vmem:[#allocation7 + $0x1c] sm:$0xf]
    %v221 = vld [vmem:[#allocation7 + $0x20] sm:$0xf]
    %v222 = vld [vmem:[#allocation7 + $0x24] sm:$0xf]
    %v223 = vld [vmem:[#allocation7 + $0x28] sm:$0xf]
    %v224 = vld [vmem:[#allocation7 + $0x2c] sm:$0xf]
    %v225 = vld [vmem:[#allocation7 + $0x30] sm:$0xf]
    %v226 = vld [vmem:[#allocation7 + $0x34] sm:$0xf]
    %v227 = vld [vmem:[#allocation7 + $0x38] sm:$0xf]
    %v228 = vld [vmem:[#allocation7 + $0x3c] sm:$0xf]
    %v229 = vperm.slane %v138, 0
    %v246 = vunpack.c.l.b16 %v213
    %v247 = vunpack.c.l.b16 %v214
    %v248 = vunpack.c.l.b16 %v215
    %v249 = vunpack.c.l.b16 %v216
    %v250 = vunpack.c.l.b16 %v217
    %v251 = vunpack.c.l.b16 %v218
    %v252 = vunpack.c.l.b16 %v219
    %v253 = vunpack.c.l.b16 %v220
    %v254 = vunpack.c.l.b16 %v221
    %v255 = vunpack.c.l.b16 %v222
    %v256 = vunpack.c.l.b16 %v223
    %v257 = vunpack.c.l.b16 %v224
    %v258 = vunpack.c.l.b16 %v225
    %v259 = vunpack.c.l.b16 %v226
    %v260 = vunpack.c.l.b16 %v227
    %v261 = vunpack.c.l.b16 %v228
    %v262 = vpack.c.b16 %v247, %v246
    %v263 = vpack.c.b16 %v249, %v248
    %v264 = vpack.c.b16 %v251, %v250
    %v265 = vpack.c.b16 %v253, %v252
    %v266 = vpack.c.b16 %v255, %v254
    %v267 = vpack.c.b16 %v257, %v256
    %v268 = vpack.c.b16 %v259, %v258
    %v269 = vpack.c.b16 %v261, %v260
    %278 = vmatpush.bf16.msra.mxu0 %v269
    %279 = vmatpush.bf16.msra.mxu0 %v268
    %280 = vmatpush.bf16.msra.mxu0 %v267
    %281 = vmatpush.bf16.msra.mxu0 %v266
    %282 = vmatpush.bf16.msra.mxu0 %v265
    %283 = vmatpush.bf16.msra.mxu0 %v264
    %284 = vmatpush.bf16.msra.mxu0 %v263
    %285 = vmatpush.bf16.msra.mxu0 %v262
    %286 = vmatmul.bf16.gmra.mxu0 %v212
    %v287 = vpop.f32.mrf.mxu0
    %v288 = vadd.f32 %v229, %v287
    %v289 = vpop.f32.mrf.mxu0
    %290 = vdwg.mxu0
    %291 = vadd.xlane.f32.xlu0 %v288
    %v292 = vpop.xlane.xlu0 %291
    %v293 = vmul.f32 %v288, %v288
    %294 = vadd.xlane.f32.xlu0 %v293
    %v295 = vpop.xlane.xlu0 %294
    %v296 = vmul.f32 %v292, 0.015625
    %v297 = vmul.f32 %v295, 0.015625
    %v298 = vmul.f32 %v296, %v296
    %v299 = vsub.f32 %v297, %v298
    %v300 = vmax.f32 %v299, 0.0
    %v301 = vsub.f32 %v288, %v296
    %v302 = vadd.f32 %v300, 1e-05
    %v303 = vrsqrt.pop %v302
    %v304 = vmul.f32 %v303, %v302
    %v305 = vmul.f32 %v304, %v303
    %v306 = vmul.f32 0.5, %v305
    %v307 = vsub.f32 1.5, %v306
    %v308 = vmul.f32 %v303, %v307
    %vm309 = vweird.f32 %v302
    %vm310 = vweird.f32 %v303
    %vm311 = vmor %vm309, %vm310
    %v312 = vsel %vm311, %v303, %v308
    %v313 = vmul.f32 %v301, %v312
    %v314 = vperm.slane %v139, 0
    %v315 = vmul.f32 %v313, %v314
    %v316 = vperm.slane %v140, 0
    %v317 = vadd.f32 %v315, %v316
    %v318 = vmax.f32 %v317, 0.0
    %v319 = vpack.c.bf16 %v318, %v318
    %v320 = vld [vmem:[#allocation8] sm:$0xf]
    %v321 = vld [vmem:[#allocation8 + $0x4] sm:$0xf]
    %v322 = vld [vmem:[#allocation8 + $0x8] sm:$0xf]
    %v323 = vld [vmem:[#allocation8 + $0xc] sm:$0xf]
    %v324 = vld [vmem:[#allocation8 + $0x10] sm:$0xf]
    %v325 = vld [vmem:[#allocation8 + $0x14] sm:$0xf]
    %v326 = vld [vmem:[#allocation8 + $0x18] sm:$0xf]
    %v327 = vld [vmem:[#allocation8 + $0x1c] sm:$0xf]
    %v328 = vld [vmem:[#allocation8 + $0x20] sm:$0xf]
    %v329 = vld [vmem:[#allocation8 + $0x24] sm:$0xf]
    %v330 = vld [vmem:[#allocation8 + $0x28] sm:$0xf]
    %v331 = vld [vmem:[#allocation8 + $0x2c] sm:$0xf]
    %v332 = vld [vmem:[#allocation8 + $0x30] sm:$0xf]
    %v333 = vld [vmem:[#allocation8 + $0x34] sm:$0xf]
    %v334 = vld [vmem:[#allocation8 + $0x38] sm:$0xf]
    %v335 = vld [vmem:[#allocation8 + $0x3c] sm:$0xf]
    %v336 = vperm.slane %v141, 0
    %v353 = vunpack.c.l.b16 %v320
    %v354 = vunpack.c.l.b16 %v321
    %v355 = vunpack.c.l.b16 %v322
    %v356 = vunpack.c.l.b16 %v323
    %v357 = vunpack.c.l.b16 %v324
    %v358 = vunpack.c.l.b16 %v325
    %v359 = vunpack.c.l.b16 %v326
    %v360 = vunpack.c.l.b16 %v327
    %v361 = vunpack.c.l.b16 %v328
    %v362 = vunpack.c.l.b16 %v329
    %v363 = vunpack.c.l.b16 %v330
    %v364 = vunpack.c.l.b16 %v331
    %v365 = vunpack.c.l.b16 %v332
    %v366 = vunpack.c.l.b16 %v333
    %v367 = vunpack.c.l.b16 %v334
    %v368 = vunpack.c.l.b16 %v335
    %v369 = vpack.c.b16 %v354, %v353
    %v370 = vpack.c.b16 %v356, %v355
    %v371 = vpack.c.b16 %v358, %v357
    %v372 = vpack.c.b16 %v360, %v359
    %v373 = vpack.c.b16 %v362, %v361
    %v374 = vpack.c.b16 %v364, %v363
    %v375 = vpack.c.b16 %v366, %v365
    %v376 = vpack.c.b16 %v368, %v367
    %385 = vmatpush.bf16.msra.mxu0 %v376
    %386 = vmatpush.bf16.msra.mxu0 %v375
    %387 = vmatpush.bf16.msra.mxu0 %v374
    %388 = vmatpush.bf16.msra.mxu0 %v373
    %389 = vmatpush.bf16.msra.mxu0 %v372
    %390 = vmatpush.bf16.msra.mxu0 %v371
    %391 = vmatpush.bf16.msra.mxu0 %v370
    %392 = vmatpush.bf16.msra.mxu0 %v369
    %393 = vmatmul.bf16.gmra.mxu0 %v319
    %v394 = vpop.f32.mrf.mxu0
    %v395 = vadd.f32 %v336, %v394
    %v396 = vpop.f32.mrf.mxu0
    %397 = vdwg.mxu0
    %398 = vadd.xlane.f32.xlu0 %v395
    %v399 = vpop.xlane.xlu0 %398
    %v400 = vmul.f32 %v395, %v395
    %401 = vadd.xlane.f32.xlu0 %v400
    %v402 = vpop.xlane.xlu0 %401
    %v403 = vmul.f32 %v399, 0.03125
    %v404 = vmul.f32 %v402, 0.03125
    %v405 = vmul.f32 %v403, %v403
    %v406 = vsub.f32 %v404, %v405
    %v407 = vmax.f32 %v406, 0.0
    %v408 = vsub.f32 %v395, %v403
    %v409 = vadd.f32 %v407, 1e-05
    %v410 = vrsqrt.pop %v409
    %v411 = vmul.f32 %v410, %v409
    %v412 = vmul.f32 %v411, %v410
    %v413 = vmul.f32 0.5, %v412
    %v414 = vsub.f32 1.5, %v413
    %v415 = vmul.f32 %v410, %v414
    %vm416 = vweird.f32 %v409
    %vm417 = vweird.f32 %v410
    %vm418 = vmor %vm416, %vm417
    %v419 = vsel %vm418, %v410, %v415
    %v420 = vmul.f32 %v408, %v419
    %v421 = vperm.slane %v142, 0
    %v422 = vmul.f32 %v420, %v421
    %v423 = vperm.slane %v143, 0
    %v424 = vadd.f32 %v422, %v423
    %v425 = vmax.f32 %v424, 0.0
    %v426 = vpack.c.bf16 %v425, %v425
    %v427 = vld [vmem:[#allocation10] sm:$0xf]
    %v428 = vld [vmem:[#allocation10 + $0x4] sm:$0xf]
    %v429 = vld [vmem:[#allocation10 + $0x8] sm:$0xf]
    %v430 = vld [vmem:[#allocation10 + $0xc] sm:$0xf]
    %v431 = vld [vmem:[#allocation10 + $0x10] sm:$0xf]
    %v432 = vld [vmem:[#allocation10 + $0x14] sm:$0xf]
    %v433 = vld [vmem:[#allocation10 + $0x18] sm:$0xf]
    %v434 = vld [vmem:[#allocation10 + $0x1c] sm:$0xf]
    %v435 = vld [vmem:[#allocation10 + $0x20] sm:$0xf]
    %v436 = vld [vmem:[#allocation10 + $0x24] sm:$0xf]
    %v437 = vld [vmem:[#allocation10 + $0x28] sm:$0xf]
    %v438 = vld [vmem:[#allocation10 + $0x2c] sm:$0xf]
    %v439 = vld [vmem:[#allocation10 + $0x30] sm:$0xf]
    %v440 = vld [vmem:[#allocation10 + $0x34] sm:$0xf]
    %v441 = vld [vmem:[#allocation10 + $0x38] sm:$0xf]
    %v442 = vld [vmem:[#allocation10 + $0x3c] sm:$0xf]
    %v443 = vperm.slane %v144, 0
    %v460 = vunpack.c.l.b16 %v427
    %v461 = vunpack.c.l.b16 %v428
    %v462 = vunpack.c.l.b16 %v429
    %v463 = vunpack.c.l.b16 %v430
    %v464 = vunpack.c.l.b16 %v431
    %v465 = vunpack.c.l.b16 %v432
    %v466 = vunpack.c.l.b16 %v433
    %v467 = vunpack.c.l.b16 %v434
    %v468 = vunpack.c.l.b16 %v435
    %v469 = vunpack.c.l.b16 %v436
    %v470 = vunpack.c.l.b16 %v437
    %v471 = vunpack.c.l.b16 %v438
    %v472 = vunpack.c.l.b16 %v439
    %v473 = vunpack.c.l.b16 %v440
    %v474 = vunpack.c.l.b16 %v441
    %v475 = vunpack.c.l.b16 %v442
    %v476 = vpack.c.b16 %v461, %v460
    %v477 = vpack.c.b16 %v463, %v462
    %v478 = vpack.c.b16 %v465, %v464
    %v479 = vpack.c.b16 %v467, %v466
    %v480 = vpack.c.b16 %v469, %v468
    %v481 = vpack.c.b16 %v471, %v470
    %v482 = vpack.c.b16 %v473, %v472
    %v483 = vpack.c.b16 %v475, %v474
    %492 = vmatpush.bf16.msra.mxu0 %v483
    %493 = vmatpush.bf16.msra.mxu0 %v482
    %494 = vmatpush.bf16.msra.mxu0 %v481
    %495 = vmatpush.bf16.msra.mxu0 %v480
    %496 = vmatpush.bf16.msra.mxu0 %v479
    %497 = vmatpush.bf16.msra.mxu0 %v478
    %498 = vmatpush.bf16.msra.mxu0 %v477
    %499 = vmatpush.bf16.msra.mxu0 %v476
    %500 = vmatmul.bf16.gmra.mxu0 %v426
    %v501 = vpop.f32.mrf.mxu0
    %v502 = vadd.f32 %v443, %v501
    %v503 = vpop.f32.mrf.mxu0
    %504 = vdwg.mxu0
    %505 = vadd.xlane.f32.xlu0 %v502
    %v506 = vpop.xlane.xlu0 %505
    %v507 = vmul.f32 %v502, %v502
    %508 = vadd.xlane.f32.xlu0 %v507
    %v509 = vpop.xlane.xlu0 %508
    %v510 = vmul.f32 %v506, 0.03125
    %v511 = vmul.f32 %v509, 0.03125
    %v512 = vmul.f32 %v510, %v510
    %v513 = vsub.f32 %v511, %v512
    %v514 = vmax.f32 %v513, 0.0
    %v515 = vsub.f32 %v502, %v510
    %v516 = vadd.f32 %v514, 1e-05
    %v517 = vrsqrt.pop %v516
    %v518 = vmul.f32 %v517, %v516
    %v519 = vmul.f32 %v518, %v517
    %v520 = vmul.f32 0.5, %v519
    %v521 = vsub.f32 1.5, %v520
    %v522 = vmul.f32 %v517, %v521
    %vm523 = vweird.f32 %v516
    %vm524 = vweird.f32 %v517
    %vm525 = vmor %vm523, %vm524
    %v526 = vsel %vm525, %v517, %v522
    %v527 = vmul.f32 %v515, %v526
    %v528 = vperm.slane %v145, 0
    %v529 = vmul.f32 %v527, %v528
    %v530 = vperm.slane %v146, 0
    %v531 = vadd.f32 %v529, %v530
    %v532 = vmax.f32 %v531, 0.0
    %v533 = vpack.c.bf16 %v532, %v532
    %v534 = vld [vmem:[#allocation11] sm:$0xf]
    %v535 = vld [vmem:[#allocation11 + $0x4] sm:$0xf]
    %v536 = vld [vmem:[#allocation11 + $0x8] sm:$0xf]
    %v537 = vld [vmem:[#allocation11 + $0xc] sm:$0xf]
    %v538 = vld [vmem:[#allocation11 + $0x10] sm:$0xf]
    %v539 = vld [vmem:[#allocation11 + $0x14] sm:$0xf]
    %v540 = vld [vmem:[#allocation11 + $0x18] sm:$0xf]
    %v541 = vld [vmem:[#allocation11 + $0x1c] sm:$0xf]
    %v542 = vld [vmem:[#allocation11 + $0x20] sm:$0xf]
    %v543 = vld [vmem:[#allocation11 + $0x24] sm:$0xf]
    %v544 = vld [vmem:[#allocation11 + $0x28] sm:$0xf]
    %v545 = vld [vmem:[#allocation11 + $0x2c] sm:$0xf]
    %v546 = vld [vmem:[#allocation11 + $0x30] sm:$0xf]
    %v547 = vld [vmem:[#allocation11 + $0x34] sm:$0xf]
    %v548 = vld [vmem:[#allocation11 + $0x38] sm:$0xf]
    %v549 = vld [vmem:[#allocation11 + $0x3c] sm:$0xf]
    %v550 = vperm.slane %v147, 0
    %v567 = vunpack.c.l.b16 %v534
    %v568 = vunpack.c.l.b16 %v535
    %v569 = vunpack.c.l.b16 %v536
    %v570 = vunpack.c.l.b16 %v537
    %v571 = vunpack.c.l.b16 %v538
    %v572 = vunpack.c.l.b16 %v539
    %v573 = vunpack.c.l.b16 %v540
    %v574 = vunpack.c.l.b16 %v541
    %v575 = vunpack.c.l.b16 %v542
    %v576 = vunpack.c.l.b16 %v543
    %v577 = vunpack.c.l.b16 %v544
    %v578 = vunpack.c.l.b16 %v545
    %v579 = vunpack.c.l.b16 %v546
    %v580 = vunpack.c.l.b16 %v547
    %v581 = vunpack.c.l.b16 %v548
    %v582 = vunpack.c.l.b16 %v549
    %v583 = vpack.c.b16 %v568, %v567
    %v584 = vpack.c.b16 %v570, %v569
    %v585 = vpack.c.b16 %v572, %v571
    %v586 = vpack.c.b16 %v574, %v573
    %v587 = vpack.c.b16 %v576, %v575
    %v588 = vpack.c.b16 %v578, %v577
    %v589 = vpack.c.b16 %v580, %v579
    %v590 = vpack.c.b16 %v582, %v581
    %599 = vmatpush.bf16.msra.mxu0 %v590
    %600 = vmatpush.bf16.msra.mxu0 %v589
    %601 = vmatpush.bf16.msra.mxu0 %v588
    %602 = vmatpush.bf16.msra.mxu0 %v587
    %603 = vmatpush.bf16.msra.mxu0 %v586
    %604 = vmatpush.bf16.msra.mxu0 %v585
    %605 = vmatpush.bf16.msra.mxu0 %v584
    %606 = vmatpush.bf16.msra.mxu0 %v583
    %607 = vmatmul.bf16.gmra.mxu0 %v533
    %v608 = vpop.f32.mrf.mxu0
    %v609 = vadd.f32 %v550, %v608
    %v610 = vpop.f32.mrf.mxu0
    %611 = vdwg.mxu0
    %v612 = vtanh.pop %v609
    %613 = vst [vmem:[#allocation14] sm:$0xff] %v612
    // Predicated region
    $region58: #{actor_forward.1} parent=1 // pred_check
      _
    $region59: #{actor_forward.1} parent=1 // pred_check_branch
      %615 = sbr.rel (0) target = $region61
    $region60: #{actor_forward.1} parent=1 // pred_region
      %617 = vsyncadd [#allocation4], 0
      %s619 = sshll.u32 [#allocation14], 4
      %s620 = int_to_ptr.vmem [resolvable:$true] %s619
      %s621 = sshll.u32 %s7, 4
      %s622 = int_to_ptr.hbm [resolvable:$true] %s621
      %624 = dma.vmem_to_hbm [thread:$0]  %s620, 128, %s622, [#allocation4]
    $region61: #{actor_forward.1} parent=1 // pred_fallthru
      _
    // Predicated region
    $region62: #{actor_forward.1} parent=1 // pred_check
      _
    $region63: #{actor_forward.1} parent=1 // pred_check_branch
      %626 = sbr.rel (0) target = $region65
    $region64: #{actor_forward.1} parent=1 // pred_region
      %628 = dma.done [#allocation4], 128
    $region65: #{actor_forward.1} parent=1 // pred_fallthru
      _
    %629 = vsyncpa [#allocation3], 1
    %630 = vsyncpa [#allocation6], 1
    %631 = vsyncpa [#allocation9], 1
    %632 = vsyncpa [#allocation12], 1
    %633 = vsyncpa [#allocation4], 1

</llo_original>
